<compile_context>
chip_gen: v7x
topology: tpu7x:2x2x1
jax: 0.10.0
libtpu: 0.0.40
codegen_flags: <defaults>
</compile_context>

<pallas_src>
import math
from functools import partial

import jax
import jax.numpy as jnp
from jax.experimental import pallas as pl
from jax.experimental.pallas import tpu as pltpu

# ----------------------------- model dims -----------------------------------
NX = 201
M = NX + 1            # 202  (branch input size, also number of grid points)
MP = 256              # lane-dense padded sensor dimension (202 -> 256)
BRANCH = [M, 256, 256]
TRUNK = [1, 128, 256]
PROJECTION = 1
BATCH = 8
BATCH_TILE = 256      # 256-row LHS tiles fill the v6e/v7x MXU; 128 is the
                      # natural unit on v5e (256 also works, slightly more VMEM)


# ----------------------------- Pallas kernel --------------------------------
def _deeponet_modified_kernel(x_ref, w_ref, b_ref, s_ref, o_ref):
    """x:[TB,MP] f32   w:[4,256,MP] (bf16 or f32)   b:[8,MP] f32
    s: SMEM f32[4]     o:[TB,1] f32

    w slabs: 0 net1 branch W1 (zero pad rows)
             1 net1 branchW2 @ trunk1^T @ fc1_W     (folded, zero pad cols)
             2 fc2_W                                (zero pad rows+cols)
             3 net2 branch W1 (zero pad rows)
    b rows : 0 net1 branch b1
             1 folded bias for slab 1 (branch b2, b0_1, fc1_b)
             2 fc2_b
             3 net2 branch b1
             4 net2 branchW2 @ trunk2^T @ (fc3 fc4 fc5)   (folded tail weights)
             5..7 zeros
    s      : 0 folded tail scalar bias, 1..3 unused
    """
    f32 = jnp.float32

    def dense_relu(v, k, brow):
        wk = w_ref[k]                                 # MXU operands in wk.dtype
        acc = jnp.dot(v.astype(wk.dtype), wk, preferred_element_type=f32)
        return jnp.maximum(acc + b_ref[pl.ds(brow, 1), :], 0.0)   # f32 VPU

    x = x_ref[...]                                    # [TB, MP]
    h1 = dense_relu(x, 0, 0)                          # net1 branch hidden [TB,256]
    y = dense_relu(h1, 1, 1)                          # folded net1 tail + fc1 (+relu)
    y2 = dense_relu(y, 2, 2)                          # fc2 (+relu)
    h2 = dense_relu(y2, 3, 3)                         # net2 branch hidden [TB,256]

    # folded net2 tail + fc3∘fc4∘fc5: VPU multiply + lane reduce + scalar bias
    v_row = b_ref[pl.ds(4, 1), :]                     # [1, 256]
    o_ref[...] = jnp.sum(h2 * v_row, axis=-1, keepdims=True) + s_ref[0]


# ----------------------------- wrapper ---------------------------------------
@partial(jax.jit, static_argnames=("batch_tile",))
def deeponet_modified_forward(x_func, w_big, b_big, scalars, *, batch_tile=BATCH_TILE):
    """x_func: [B, M] raw (unpadded) input functions; (w_big, b_big, scalars)
    from pack_params()."""
    bsz, m_in = x_func.shape
    x_pad = jnp.pad(x_func, ((0, 0), (0, MP - m_in)))      # fuses inside this jit

    flops = int(bsz * (2 * 4 * 256 * MP + 2 * 256))
    bytes_acc = int(w_big.size * w_big.dtype.itemsize + b_big.size * 4 + 16
                    + bsz * MP * 4 + bsz * PROJECTION * 4)
    cost = pl.CostEstimate(flops=flops, transcendentals=0, bytes_accessed=bytes_acc)

    smem_spec = pl.BlockSpec(memory_space=pltpu.MemorySpace.SMEM)

    if bsz <= batch_tile:
        # Tiny batch: gridless, everything resident in VMEM (~0.6 MB footprint).
        vmem = pl.BlockSpec(memory_space=pltpu.MemorySpace.VMEM)
        return pl.pallas_call(
            _deeponet_modified_kernel,
            out_shape=jax.ShapeDtypeStruct((bsz, PROJECTION), jnp.float32),
            in_specs=[vmem, vmem, vmem, smem_spec],
            out_specs=vmem,
            cost_estimate=cost,
        )(x_pad, w_big, b_big, scalars)

    # Bulk batch: grid over batch tiles. Weights/biases use constant index_maps
    # so they are DMA'd once and stay VMEM-resident across all tiles; the batch
    # axis is "parallel" (splits across v7x's two TensorCores, harmless on
    # single-TC v5e/v6e).
    nt = pl.cdiv(bsz, batch_tile)
    bsz_pad = nt * batch_tile
    x_pad = jnp.pad(x_pad, ((0, bsz_pad - bsz), (0, 0)))
    out = pl.pallas_call(
        _deeponet_modified_kernel,
        out_shape=jax.ShapeDtypeStruct((bsz_pad, PROJECTION), jnp.float32),
        grid=(nt,),
        in_specs=[
            pl.BlockSpec((batch_tile, MP), lambda i: (i, 0)),
            pl.BlockSpec((4, 256, MP), lambda i: (0, 0, 0)),   # resident weights
            pl.BlockSpec((8, MP), lambda i: (0, 0)),           # resident biases
            smem_spec,
        ],
        out_specs=pl.BlockSpec((batch_tile, PROJECTION), lambda i: (i, 0)),
        compiler_params=pltpu.CompilerParams(dimension_semantics=("parallel",)),
        cost_estimate=cost,
    )(x_pad, w_big, b_big, scalars)
    return out[:bsz]


# ----------------------------- host-side packing -----------------------------
def _pad_to(a, shape):
    return jnp.pad(a, [(0, t - s) for s, t in zip(a.shape, shape)])


def pack_params(params, grid_pts, *, weight_dtype=jnp.bfloat16):
    """Precompute trunks, fold every activation-free linear segment (in f32 at
    highest matmul precision), zero-pad m->256, pack into 3 buffers."""
    i = 0
    net1 = params[i:i + 9]; i += 9
    fc1_w, fc1_b = params[i:i + 2]; i += 2
    fc2_w, fc2_b = params[i:i + 2]; i += 2
    net2 = params[i:i + 9]; i += 9
    fc3_w, fc3_b = params[i:i + 2]; i += 2
    fc4_w, fc4_b = params[i:i + 2]; i += 2
    fc5_w, fc5_b = params[i:i + 2]; i += 2

    n1_bw1, n1_bb1, n1_bw2, n1_bb2 = net1[0], net1[1], net1[2], net1[3]
    n2_bw1, n2_bb1, n2_bw2, n2_bb2 = net2[0], net2[1], net2[2], net2[3]
    b0_1, b0_2 = net1[8][0, 0], net2[8][0, 0]

    def trunk_out(q):
        # trunk MLP on the static grid; dde applies relu to hidden AND output.
        _, _, _, _, tw1, tb1, tw2, tb2, _ = q
        th = jnp.maximum(grid_pts @ tw1 + tb1, 0.0)        # [m, 128]
        return jnp.maximum(th @ tw2 + tb2, 0.0)            # [m, 256]

    with jax.default_matmul_precision("highest"):          # fold exactly in f32
        T1 = trunk_out(net1)
        T2 = trunk_out(net2)

        # net1 tail folded with fc1 (pre-ReLU):
        #   (h1@W2 + b2)@T1^T@fc1_w + b0_1*colsum(fc1_w) + fc1_b
        A1 = T1.T @ fc1_w                                  # [256, m]
        slab1 = n1_bw2 @ A1                                # [256, m]
        bias1 = n1_bb2 @ A1 + b0_1 * fc1_w.sum(axis=0, keepdims=True) + fc1_b

        # activation-free fc3∘fc4∘fc5 folded, then folded with the net2 tail:
        w_tail = fc3_w @ fc4_w @ fc5_w                     # [m, 1]
        b_tail = (fc3_b @ fc4_w + fc4_b) @ fc5_w + fc5_b   # [1, 1]
        u = T2.T @ w_tail                                  # [256, 1]
        v = n2_bw2 @ u                                     # [256, 1]
        scalar_tail = (n2_bb2 @ u)[0, 0] + b0_2 * jnp.sum(w_tail) + b_tail[0, 0]

    w_big = jnp.stack([
        _pad_to(n1_bw1, (MP, 256)),       # 0: net1 branch W1 (zero pad rows)
        _pad_to(slab1, (256, MP)),        # 1: folded net1 tail + fc1 (zero pad cols)
        _pad_to(fc2_w, (MP, MP)),         # 2: fc2
        _pad_to(n2_bw1, (MP, 256)),       # 3: net2 branch W1 (zero pad rows)
    ], axis=0).astype(weight_dtype)       # [4, 256, MP]

    b_big = jnp.concatenate([
        n1_bb1,                           # 0
        _pad_to(bias1, (1, MP)),          # 1
        _pad_to(fc2_b, (1, MP)),          # 2
        n2_bb1,                           # 3
        _pad_to(v.T, (1, MP)),            # 4: folded tail weights as a row
        jnp.zeros((3, MP), jnp.float32),  # 5-7: unused
    ], axis=0).astype(jnp.float32)        # [8, MP]; bias/ReLU path stays f32

    scalars = jnp.array([scalar_tail, 0.0, 0.0, 0.0], jnp.float32)
    return w_big, b_big, scalars


# ----------------------------- parameter init -------------------------------
def _glorot(key, shape):
    fan_in, fan_out = shape
    std = math.sqrt(2.0 / (fan_in + fan_out))
    return std * jax.random.normal(key, shape, dtype=jnp.float32)


def init_params(key):
    ks = iter(jax.random.split(key, 32))
    p = []

    def deeponet_params():
        return [
            _glorot(next(ks), (BRANCH[0], BRANCH[1])), jnp.zeros((1, BRANCH[1]), jnp.float32),
            _glorot(next(ks), (BRANCH[1], BRANCH[2])), jnp.zeros((1, BRANCH[2]), jnp.float32),
            _glorot(next(ks), (TRUNK[0], TRUNK[1])),   jnp.zeros((1, TRUNK[1]), jnp.float32),
            _glorot(next(ks), (TRUNK[1], TRUNK[2])),   jnp.zeros((1, TRUNK[2]), jnp.float32),
            jnp.zeros((1, 1), jnp.float32),            # scalar output bias b
        ]

    p += deeponet_params()                                            # net1
    p += [_glorot(next(ks), (M, M)), jnp.zeros((1, M), jnp.float32)]  # fc1
    p += [_glorot(next(ks), (M, M)), jnp.zeros((1, M), jnp.float32)]  # fc2
    p += deeponet_params()                                            # net2
    p += [_glorot(next(ks), (M, 128)), jnp.zeros((1, 128), jnp.float32)]            # fc3
    p += [_glorot(next(ks), (128, 64)), jnp.zeros((1, 64), jnp.float32)]            # fc4
    p += [_glorot(next(ks), (64, PROJECTION)), jnp.zeros((1, PROJECTION), jnp.float32)]  # fc5
    return p


# ----------------------------- pure-JAX reference ---------------------------
def reference_forward(x_func, grid_pts, params):
    relu = lambda v: jnp.maximum(v, 0.0)

    def deeponet(xf, q):
        bw1, bb1, bw2, bb2, tw1, tb1, tw2, tb2, b0 = q
        br = relu(xf @ bw1 + bb1) @ bw2 + bb2
        tr = relu(relu(grid_pts @ tw1 + tb1) @ tw2 + tb2)
        return br @ tr.T + b0[0, 0]

    with jax.default_matmul_precision("highest"):
        i = 0
        net1 = params[i:i + 9]; i += 9
        fc1_w, fc1_b = params[i:i + 2]; i += 2
        fc2_w, fc2_b = params[i:i + 2]; i += 2
        net2 = params[i:i + 9]; i += 9
        fc3_w, fc3_b = params[i:i + 2]; i += 2
        fc4_w, fc4_b = params[i:i + 2]; i += 2
        fc5_w, fc5_b = params[i:i + 2]; i += 2

        y = deeponet(x_func, net1)
        y = relu(y @ fc1_w + fc1_b)
        y = relu(y @ fc2_w + fc2_b)
        y = deeponet(y, net2)
        y = y @ fc3_w + fc3_b
        y = y @ fc4_w + fc4_b
        y = y @ fc5_w + fc5_b
        return y


# ----------------------------- driver ----------------------------------------
if __name__ == "__main__":
    key = jax.random.PRNGKey(0)
    k_x, k_p, k_xb = jax.random.split(key, 3)

    grid_pts = jnp.linspace(0.0, 1.0, M, dtype=jnp.float32).reshape(M, 1)     # [m, 1]
    params = init_params(k_p)

    # --- small batch, gridless path, f32 weights: strict check of the folds ---
    x_small = jax.random.normal(k_x, (BATCH, M), dtype=jnp.float32)           # [B, m]
    ref_small = jax.block_until_ready(reference_forward(x_small, grid_pts, params))

    packed_f32 = pack_params(params, grid_pts, weight_dtype=jnp.float32)
    out_f32 = jax.block_until_ready(deeponet_modified_forward(x_small, *packed_f32))
    assert out_f32.shape == (BATCH, PROJECTION), out_f32.shape
    err = float(jnp.max(jnp.abs(out_f32 - ref_small)) / (jnp.max(jnp.abs(ref_small)) + 1e-6))
    assert err < 1e-3, ("f32", err)

    # --- small batch, bf16 MXU operands (production default) ------------------
    packed_bf16 = pack_params(params, grid_pts, weight_dtype=jnp.bfloat16)
    out_bf16 = jax.block_until_ready(deeponet_modified_forward(x_small, *packed_bf16))
    err = float(jnp.max(jnp.abs(out_bf16 - ref_small)) / (jnp.max(jnp.abs(ref_small)) + 1e-6))
    assert err < 3e-2, ("bf16", err)

    # --- bulk batch: grid over 256-row tiles, resident bf16 weights -----------
    BIG = 512
    x_big = jax.random.normal(k_xb, (BIG, M), dtype=jnp.float32)
    ref_big = jax.block_until_ready(reference_forward(x_big, grid_pts, params))
    out_big = jax.block_until_ready(
        deeponet_modified_forward(x_big, *packed_bf16, batch_tile=BATCH_TILE))
    assert out_big.shape == (BIG, PROJECTION), out_big.shape
    err = float(jnp.max(jnp.abs(out_big - ref_big)) / (jnp.max(jnp.abs(ref_big)) + 1e-6))
    assert err < 3e-2, ("bf16-grid", err)

    print("KERNEL_OK")
</pallas_src>

<mosaic_0001>
module attributes {stable_mosaic.version = 11 : i64} {
  func.func @_deeponet_modified_kernel(%arg0: memref<8x256xf32, #tpu.memory_space<vmem>>, %arg1: memref<4x256x256xf32, #tpu.memory_space<vmem>>, %arg2: memref<8x256xf32, #tpu.memory_space<vmem>>, %arg3: memref<4xf32, #tpu.memory_space<smem>>, %arg4: memref<8x1xf32, #tpu.memory_space<vmem>>) attributes {dimension_semantics = [], scalar_prefetch = 0 : i64, scratch_operands = 0 : i64, tpu.core_type = #tpu.core_type<tc>} {
    %c0 = arith.constant 0 : index
    %c0_0 = arith.constant 0 : index
    %0 = vector.load %arg0[%c0, %c0_0] : memref<8x256xf32, #tpu.memory_space<vmem>>, vector<8x256xf32>
    %c0_1 = arith.constant 0 : index
    %c0_2 = arith.constant 0 : index
    %c0_3 = arith.constant 0 : index
    %1 = vector.load %arg1[%c0_1, %c0_2, %c0_3] : memref<4x256x256xf32, #tpu.memory_space<vmem>>, vector<1x256x256xf32>
    %2 = vector.shape_cast %1 : vector<1x256x256xf32> to vector<256x256xf32>
    %cst = arith.constant dense<0.000000e+00> : vector<8x256xf32>
    %3 = tpu.matmul %0, %2, %cst {dimension_numbers = #tpu.dot_dimension_numbers<[1], [0], [0], [1], [0, 0, 1, 1], [], []>} : vector<8x256xf32>, vector<256x256xf32>, vector<8x256xf32> -> vector<8x256xf32>
    %c0_4 = arith.constant 0 : index
    %c0_5 = arith.constant 0 : index
    %4 = vector.load %arg2[%c0_4, %c0_5] : memref<8x256xf32, #tpu.memory_space<vmem>>, vector<1x256xf32>
    %5 = vector.broadcast %4 : vector<1x256xf32> to vector<8x256xf32>
    %6 = arith.addf %3, %5 : vector<8x256xf32>
    %cst_6 = arith.constant 0.000000e+00 : f32
    %7 = vector.broadcast %cst_6 : f32 to vector<8x256xf32>
    %8 = arith.maximumf %6, %7 : vector<8x256xf32>
    %c1 = arith.constant 1 : index
    %c0_7 = arith.constant 0 : index
    %c0_8 = arith.constant 0 : index
    %9 = vector.load %arg1[%c1, %c0_7, %c0_8] : memref<4x256x256xf32, #tpu.memory_space<vmem>>, vector<1x256x256xf32>
    %10 = vector.shape_cast %9 : vector<1x256x256xf32> to vector<256x256xf32>
    %cst_9 = arith.constant dense<0.000000e+00> : vector<8x256xf32>
    %11 = tpu.matmul %8, %10, %cst_9 {dimension_numbers = #tpu.dot_dimension_numbers<[1], [0], [0], [1], [0, 0, 1, 1], [], []>} : vector<8x256xf32>, vector<256x256xf32>, vector<8x256xf32> -> vector<8x256xf32>
    %c1_10 = arith.constant 1 : index
    %c0_11 = arith.constant 0 : index
    %12 = vector.load %arg2[%c1_10, %c0_11] : memref<8x256xf32, #tpu.memory_space<vmem>>, vector<1x256xf32>
    %13 = vector.broadcast %12 : vector<1x256xf32> to vector<8x256xf32>
    %14 = arith.addf %11, %13 : vector<8x256xf32>
    %cst_12 = arith.constant 0.000000e+00 : f32
    %15 = vector.broadcast %cst_12 : f32 to vector<8x256xf32>
    %16 = arith.maximumf %14, %15 : vector<8x256xf32>
    %c2 = arith.constant 2 : index
    %c0_13 = arith.constant 0 : index
    %c0_14 = arith.constant 0 : index
    %17 = vector.load %arg1[%c2, %c0_13, %c0_14] : memref<4x256x256xf32, #tpu.memory_space<vmem>>, vector<1x256x256xf32>
    %18 = vector.shape_cast %17 : vector<1x256x256xf32> to vector<256x256xf32>
    %cst_15 = arith.constant dense<0.000000e+00> : vector<8x256xf32>
    %19 = tpu.matmul %16, %18, %cst_15 {dimension_numbers = #tpu.dot_dimension_numbers<[1], [0], [0], [1], [0, 0, 1, 1], [], []>} : vector<8x256xf32>, vector<256x256xf32>, vector<8x256xf32> -> vector<8x256xf32>
    %c2_16 = arith.constant 2 : index
    %c0_17 = arith.constant 0 : index
    %20 = vector.load %arg2[%c2_16, %c0_17] : memref<8x256xf32, #tpu.memory_space<vmem>>, vector<1x256xf32>
    %21 = vector.broadcast %20 : vector<1x256xf32> to vector<8x256xf32>
    %22 = arith.addf %19, %21 : vector<8x256xf32>
    %cst_18 = arith.constant 0.000000e+00 : f32
    %23 = vector.broadcast %cst_18 : f32 to vector<8x256xf32>
    %24 = arith.maximumf %22, %23 : vector<8x256xf32>
    %c3 = arith.constant 3 : index
    %c0_19 = arith.constant 0 : index
    %c0_20 = arith.constant 0 : index
    %25 = vector.load %arg1[%c3, %c0_19, %c0_20] : memref<4x256x256xf32, #tpu.memory_space<vmem>>, vector<1x256x256xf32>
    %26 = vector.shape_cast %25 : vector<1x256x256xf32> to vector<256x256xf32>
    %cst_21 = arith.constant dense<0.000000e+00> : vector<8x256xf32>
    %27 = tpu.matmul %24, %26, %cst_21 {dimension_numbers = #tpu.dot_dimension_numbers<[1], [0], [0], [1], [0, 0, 1, 1], [], []>} : vector<8x256xf32>, vector<256x256xf32>, vector<8x256xf32> -> vector<8x256xf32>
    %c3_22 = arith.constant 3 : index
    %c0_23 = arith.constant 0 : index
    %28 = vector.load %arg2[%c3_22, %c0_23] : memref<8x256xf32, #tpu.memory_space<vmem>>, vector<1x256xf32>
    %29 = vector.broadcast %28 : vector<1x256xf32> to vector<8x256xf32>
    %30 = arith.addf %27, %29 : vector<8x256xf32>
    %cst_24 = arith.constant 0.000000e+00 : f32
    %31 = vector.broadcast %cst_24 : f32 to vector<8x256xf32>
    %32 = arith.maximumf %30, %31 : vector<8x256xf32>
    %c4 = arith.constant 4 : index
    %c0_25 = arith.constant 0 : index
    %33 = vector.load %arg2[%c4, %c0_25] : memref<8x256xf32, #tpu.memory_space<vmem>>, vector<1x256xf32>
    %34 = vector.broadcast %33 : vector<1x256xf32> to vector<8x256xf32>
    %35 = arith.mulf %32, %34 : vector<8x256xf32>
    %cst_26 = arith.constant dense<0.000000e+00> : vector<8xf32>
    %36 = vector.multi_reduction <add>, %35, %cst_26 [1] : vector<8x256xf32> to vector<8xf32>
    %37 = vector.shape_cast %36 : vector<8xf32> to vector<8x1xf32>
    %c0_27 = arith.constant 0 : index
    %38 = memref.load %arg3[%c0_27] : memref<4xf32, #tpu.memory_space<smem>>
    %39 = vector.broadcast %38 : f32 to vector<8x1xf32>
    %40 = arith.addf %37, %39 : vector<8x1xf32>
    %c0_28 = arith.constant 0 : index
    %c0_29 = arith.constant 0 : index
    %41 = vector.load %arg4[%c0_28, %c0_29] : memref<8x1xf32, #tpu.memory_space<vmem>>, vector<8x1xf32>
    tpu.vector_store %arg4[%c0_28, %c0_29], %40 {strides = array<i32>} : memref<8x1xf32, #tpu.memory_space<vmem>>, vector<8x1xf32>,
    return
  }
}

</mosaic_0001>

<llo_original>
// kernel: deeponet_modified_forward.1
$region0: #{deeponet_modified_forward.1}
  #allocation0 [shape = 'u32[]', space=smem, size = 0x4, offset = 0x4, fixed_abs, tag = 'smem constant byte address 0x4 - core index']
  #allocation1 [shape = 'u32[144,128]{1,0:T(1,128)}', space=vmem, size = 0x12000, scoped, tag = 'internal scratch']
  %s0 = inlined_call_operand.vmem [shape: f32[8,256], index: 0, kind: input, shape index: {}]
  %s1 = inlined_call_operand.hbm [shape: f32[4,256,256], index: 1, kind: input, shape index: {}]
  %s2 = inlined_call_operand.vmem [shape: f32[8,256], index: 2, kind: input, shape index: {}]
  %s3 = inlined_call_operand.vmem [shape: f32[4], index: 3, kind: input, shape index: {}]
  %s4 = inlined_call_operand.vmem [shape: f32[8,1], index: 4, kind: output, shape index: {}]
  %s5 = sld [smem:[#allocation0]]
  $region34: #{deeponet_modified_forward.1} parent=0
    _
  %s7 = ssub.s32 1, %s5
  %s8 = scalar_select 0, %s7, %s5
  $region1: #{deeponet_modified_forward.1} parent=0
    #allocation2 [shape = 'u8[1048576]{0}', space=vmem, size = 0x100000, scoped, tag = 'input window, operand 1, single buffered']
    #allocation3 [shape = 's32[1]{0}', space=sflag, size = 0x4, scoped, tag = 'scoped memory for deeponet_modified_forward.1']
    #allocation4 [shape = 's32[1]{0}', space=sflag, size = 0x4, scoped, tag = 'scoped memory for deeponet_modified_forward.1']
    #allocation5 [shape = 'u8[512]{0}', space=smem, size = 0x200, scoped, tag = 'input window, operand 3, single buffered']
    %9 = vsyncpa [#allocation3], 0
    %10 = vsyncpa [#allocation4], 0
    // Predicated region
    $region2: #{deeponet_modified_forward.1} parent=1 // pred_check
      _
    $region3: #{deeponet_modified_forward.1} parent=1 // pred_check_branch
      %12 = sbr.rel (0) target = $region5
    $region4: #{deeponet_modified_forward.1} parent=1 // pred_region
      _
    $region5: #{deeponet_modified_forward.1} parent=1 // pred_fallthru
      _
    // Predicated region
    $region6: #{deeponet_modified_forward.1} parent=1 // pred_check
      _
    $region7: #{deeponet_modified_forward.1} parent=1 // pred_check_branch
      %14 = sbr.rel (0) target = $region9
    $region8: #{deeponet_modified_forward.1} parent=1 // pred_region
      %s16 = ssub.s32 32768, 32768
      %17 = vsyncadd [#allocation3], %s16
      %s18 = sshll.u32 [#allocation2], 4
      %s19 = int_to_ptr.vmem [resolvable:$true] %s18
      %24 = dma.hbm_to_vmem [thread:$0]  %s1, 32768, %s19, [#allocation3], 256, 256, 16
    $region9: #{deeponet_modified_forward.1} parent=1 // pred_fallthru
      _
    // Predicated region
    $region10: #{deeponet_modified_forward.1} parent=1 // pred_check
      _
    $region11: #{deeponet_modified_forward.1} parent=1 // pred_check_branch
      %26 = sbr.rel (0) target = $region13
    $region12: #{deeponet_modified_forward.1} parent=1 // pred_region
      _
    $region13: #{deeponet_modified_forward.1} parent=1 // pred_fallthru
      _
    // Predicated region
    $region14: #{deeponet_modified_forward.1} parent=1 // pred_check
      _
    $region15: #{deeponet_modified_forward.1} parent=1 // pred_check_branch
      %28 = sbr.rel (0) target = $region17
    $region16: #{deeponet_modified_forward.1} parent=1 // pred_region
      %s30 = ssub.s32 16, 16
      %31 = vsyncadd [#allocation4], %s30
      %s33 = sshll.u32 %s3, 4
      %s34 = int_to_ptr.vmem [resolvable:$true] %s33
      %36 = dma.vmem_to_smem %s34, 16, [#allocation5], [#allocation4]
    $region17: #{deeponet_modified_forward.1} parent=1 // pred_fallthru
      _
    // Predicated region
    $region18: #{deeponet_modified_forward.1} parent=1 // pred_check
      _
    $region19: #{deeponet_modified_forward.1} parent=1 // pred_check_branch
      %38 = sbr.rel (0) target = $region21
    $region20: #{deeponet_modified_forward.1} parent=1 // pred_region
      %39 = dma.done [#allocation3], 32768
    $region21: #{deeponet_modified_forward.1} parent=1 // pred_fallthru
      _
    // Predicated region
    $region22: #{deeponet_modified_forward.1} parent=1 // pred_check
      _
    $region23: #{deeponet_modified_forward.1} parent=1 // pred_check_branch
      %41 = sbr.rel (0) target = $region25
    $region24: #{deeponet_modified_forward.1} parent=1 // pred_region
      %42 = dma.done [#allocation4], 16
    $region25: #{deeponet_modified_forward.1} parent=1 // pred_fallthru
      _
    %43 = sfence
    %v44 = vld [vmem:[%s0] sm:$0xff]
    %v45 = vld [vmem:[%s0 + $0x8] sm:$0xff]
    %v46 = vld [vmem:[#allocation2] sm:$0xff]
    %v47 = vld [vmem:[#allocation2 + $0x8] sm:$0xff]
    %v48 = vld [vmem:[#allocation2 + $0x10] sm:$0xff]
    %v49 = vld [vmem:[#allocation2 + $0x18] sm:$0xff]
    %v50 = vld [vmem:[#allocation2 + $0x20] sm:$0xff]
    %v51 = vld [vmem:[#allocation2 + $0x28] sm:$0xff]
    %v52 = vld [vmem:[#allocation2 + $0x30] sm:$0xff]
    %v53 = vld [vmem:[#allocation2 + $0x38] sm:$0xff]
    %v54 = vld [vmem:[#allocation2 + $0x40] sm:$0xff]
    %v55 = vld [vmem:[#allocation2 + $0x48] sm:$0xff]
    %v56 = vld [vmem:[#allocation2 + $0x50] sm:$0xff]
    %v57 = vld [vmem:[#allocation2 + $0x58] sm:$0xff]
    %v58 = vld [vmem:[#allocation2 + $0x60] sm:$0xff]
    %v59 = vld [vmem:[#allocation2 + $0x68] sm:$0xff]
    %v60 = vld [vmem:[#allocation2 + $0x70] sm:$0xff]
    %v61 = vld [vmem:[#allocation2 + $0x78] sm:$0xff]
    %v62 = vld [vmem:[#allocation2 + $0x80] sm:$0xff]
    %v63 = vld [vmem:[#allocation2 + $0x88] sm:$0xff]
    %v64 = vld [vmem:[#allocation2 + $0x90] sm:$0xff]
    %v65 = vld [vmem:[#allocation2 + $0x98] sm:$0xff]
    %v66 = vld [vmem:[#allocation2 + $0xa0] sm:$0xff]
    %v67 = vld [vmem:[#allocation2 + $0xa8] sm:$0xff]
    %v68 = vld [vmem:[#allocation2 + $0xb0] sm:$0xff]
    %v69 = vld [vmem:[#allocation2 + $0xb8] sm:$0xff]
    %v70 = vld [vmem:[#allocation2 + $0xc0] sm:$0xff]
    %v71 = vld [vmem:[#allocation2 + $0xc8] sm:$0xff]
    %v72 = vld [vmem:[#allocation2 + $0xd0] sm:$0xff]
    %v73 = vld [vmem:[#allocation2 + $0xd8] sm:$0xff]
    %v74 = vld [vmem:[#allocation2 + $0xe0] sm:$0xff]
    %v75 = vld [vmem:[#allocation2 + $0xe8] sm:$0xff]
    %v76 = vld [vmem:[#allocation2 + $0xf0] sm:$0xff]
    %v77 = vld [vmem:[#allocation2 + $0xf8] sm:$0xff]
    %v78 = vld [vmem:[#allocation2 + $0x100] sm:$0xff]
    %v79 = vld [vmem:[#allocation2 + $0x108] sm:$0xff]
    %v80 = vld [vmem:[#allocation2 + $0x110] sm:$0xff]
    %v81 = vld [vmem:[#allocation2 + $0x118] sm:$0xff]
    %v82 = vld [vmem:[#allocation2 + $0x120] sm:$0xff]
    %v83 = vld [vmem:[#allocation2 + $0x128] sm:$0xff]
    %v84 = vld [vmem:[#allocation2 + $0x130] sm:$0xff]
    %v85 = vld [vmem:[#allocation2 + $0x138] sm:$0xff]
    %v86 = vld [vmem:[#allocation2 + $0x140] sm:$0xff]
    %v87 = vld [vmem:[#allocation2 + $0x148] sm:$0xff]
    %v88 = vld [vmem:[#allocation2 + $0x150] sm:$0xff]
    %v89 = vld [vmem:[#allocation2 + $0x158] sm:$0xff]
    %v90 = vld [vmem:[#allocation2 + $0x160] sm:$0xff]
    %v91 = vld [vmem:[#allocation2 + $0x168] sm:$0xff]
    %v92 = vld [vmem:[#allocation2 + $0x170] sm:$0xff]
    %v93 = vld [vmem:[#allocation2 + $0x178] sm:$0xff]
    %v94 = vld [vmem:[#allocation2 + $0x180] sm:$0xff]
    %v95 = vld [vmem:[#allocation2 + $0x188] sm:$0xff]
    %v96 = vld [vmem:[#allocation2 + $0x190] sm:$0xff]
    %v97 = vld [vmem:[#allocation2 + $0x198] sm:$0xff]
    %v98 = vld [vmem:[#allocation2 + $0x1a0] sm:$0xff]
    %v99 = vld [vmem:[#allocation2 + $0x1a8] sm:$0xff]
    %v100 = vld [vmem:[#allocation2 + $0x1b0] sm:$0xff]
    %v101 = vld [vmem:[#allocation2 + $0x1b8] sm:$0xff]
    %v102 = vld [vmem:[#allocation2 + $0x1c0] sm:$0xff]
    %v103 = vld [vmem:[#allocation2 + $0x1c8] sm:$0xff]
    %v104 = vld [vmem:[#allocation2 + $0x1d0] sm:$0xff]
    %v105 = vld [vmem:[#allocation2 + $0x1d8] sm:$0xff]
    %v106 = vld [vmem:[#allocation2 + $0x1e0] sm:$0xff]
    %v107 = vld [vmem:[#allocation2 + $0x1e8] sm:$0xff]
    %v108 = vld [vmem:[#allocation2 + $0x1f0] sm:$0xff]
    %v109 = vld [vmem:[#allocation2 + $0x1f8] sm:$0xff]
    %v110 = vld [vmem:[%s2] ss:$8 sm:$0x3]
    %v112 = vlaneseq
    %v113 = vshrl.u32 %v112, 7
    %v114 = vsub.s32 0, %v113
    %v115 = vrot.slane %v110, %v114
    %v116 = vlaneseq
    %v117 = vshrl.u32 %v116, 7
    %v118 = vsub.s32 1, %v117
    %v119 = vrot.slane %v110, %v118
    %122 = vmatprep.subr.mxu0 %v47
    %123 = vmatpush1.msra.mxu0 %v46
    %124 = vmatprep.subr.mxu0 %v49
    %125 = vmatpush1.msra.mxu0 %v48
    %126 = vmatprep.subr.mxu0 %v51
    %127 = vmatpush1.msra.mxu0 %v50
    %128 = vmatprep.subr.mxu0 %v53
    %129 = vmatpush1.msra.mxu0 %v52
    %130 = vmatprep.subr.mxu0 %v55
    %131 = vmatpush1.msra.mxu0 %v54
    %132 = vmatprep.subr.mxu0 %v57
    %133 = vmatpush1.msra.mxu0 %v56
    %134 = vmatprep.subr.mxu0 %v59
    %135 = vmatpush1.msra.mxu0 %v58
    %136 = vmatprep.subr.mxu0 %v61
    %137 = vmatpush1.msra.mxu0 %v60
    %138 = vmatprep.subr.mxu0 %v63
    %139 = vmatpush1.msra.mxu0 %v62
    %140 = vmatprep.subr.mxu0 %v65
    %141 = vmatpush1.msra.mxu0 %v64
    %142 = vmatprep.subr.mxu0 %v67
    %143 = vmatpush1.msra.mxu0 %v66
    %144 = vmatprep.subr.mxu0 %v69
    %145 = vmatpush1.msra.mxu0 %v68
    %146 = vmatprep.subr.mxu0 %v71
    %147 = vmatpush1.msra.mxu0 %v70
    %148 = vmatprep.subr.mxu0 %v73
    %149 = vmatpush1.msra.mxu0 %v72
    %150 = vmatprep.subr.mxu0 %v75
    %151 = vmatpush1.msra.mxu0 %v74
    %152 = vmatprep.subr.mxu0 %v77
    %153 = vmatpush1.msra.mxu0 %v76
    %154 = vmatprep.subr.mxu0 %v79
    %155 = vmatpush1.msra.mxu0 %v78
    %156 = vmatprep.subr.mxu0 %v81
    %157 = vmatpush1.msra.mxu0 %v80
    %158 = vmatprep.subr.mxu0 %v83
    %159 = vmatpush1.msra.mxu0 %v82
    %160 = vmatprep.subr.mxu0 %v85
    %161 = vmatpush1.msra.mxu0 %v84
    %162 = vmatprep.subr.mxu0 %v87
    %163 = vmatpush1.msra.mxu0 %v86
    %164 = vmatprep.subr.mxu0 %v89
    %165 = vmatpush1.msra.mxu0 %v88
    %166 = vmatprep.subr.mxu0 %v91
    %167 = vmatpush1.msra.mxu0 %v90
    %168 = vmatprep.subr.mxu0 %v93
    %169 = vmatpush1.msra.mxu0 %v92
    %170 = vmatprep.subr.mxu0 %v95
    %171 = vmatpush1.msra.mxu0 %v94
    %172 = vmatprep.subr.mxu0 %v97
    %173 = vmatpush1.msra.mxu0 %v96
    %174 = vmatprep.subr.mxu0 %v99
    %175 = vmatpush1.msra.mxu0 %v98
    %176 = vmatprep.subr.mxu0 %v101
    %177 = vmatpush1.msra.mxu0 %v100
    %178 = vmatprep.subr.mxu0 %v103
    %179 = vmatpush1.msra.mxu0 %v102
    %180 = vmatprep.subr.mxu0 %v105
    %181 = vmatpush1.msra.mxu0 %v104
    %182 = vmatprep.subr.mxu0 %v107
    %183 = vmatpush1.msra.mxu0 %v106
    %184 = vmatprep.subr.mxu0 %v109
    %185 = vmatpush1.msra.mxu0 %v108
    %186 = vmatprep.mubr.f32.mxu0 %v45
    %187 = vmatmul.mubr.f32.gmra.mrb[0].mxu0 %v44
    %v188 = vpop.f32.mrb[0].mxu0
    %v189 = vadd.f32 %v115, %v188
    %v190 = vpop.f32.mrb[0].mxu0
    %v191 = vadd.f32 %v119, %v190
    %192 = vdwg.mxu0
    %v193 = vmax.f32 %v189, 0.0
    %v194 = vmax.f32 %v191, 0.0
    %s195 = scalar_lea.vmem [#allocation2], 512
    %v196 = vld [vmem:[%s195] sm:$0xff]
    %v197 = vld [vmem:[%s195 + $0x8] sm:$0xff]
    %v198 = vld [vmem:[%s195 + $0x10] sm:$0xff]
    %v199 = vld [vmem:[%s195 + $0x18] sm:$0xff]
    %v200 = vld [vmem:[%s195 + $0x20] sm:$0xff]
    %v201 = vld [vmem:[%s195 + $0x28] sm:$0xff]
    %v202 = vld [vmem:[%s195 + $0x30] sm:$0xff]
    %v203 = vld [vmem:[%s195 + $0x38] sm:$0xff]
    %v204 = vld [vmem:[%s195 + $0x40] sm:$0xff]
    %v205 = vld [vmem:[%s195 + $0x48] sm:$0xff]
    %v206 = vld [vmem:[%s195 + $0x50] sm:$0xff]
    %v207 = vld [vmem:[%s195 + $0x58] sm:$0xff]
    %v208 = vld [vmem:[%s195 + $0x60] sm:$0xff]
    %v209 = vld [vmem:[%s195 + $0x68] sm:$0xff]
    %v210 = vld [vmem:[%s195 + $0x70] sm:$0xff]
    %v211 = vld [vmem:[%s195 + $0x78] sm:$0xff]
    %v212 = vld [vmem:[%s195 + $0x80] sm:$0xff]
    %v213 = vld [vmem:[%s195 + $0x88] sm:$0xff]
    %v214 = vld [vmem:[%s195 + $0x90] sm:$0xff]
    %v215 = vld [vmem:[%s195 + $0x98] sm:$0xff]
    %v216 = vld [vmem:[%s195 + $0xa0] sm:$0xff]
    %v217 = vld [vmem:[%s195 + $0xa8] sm:$0xff]
    %v218 = vld [vmem:[%s195 + $0xb0] sm:$0xff]
    %v219 = vld [vmem:[%s195 + $0xb8] sm:$0xff]
    %v220 = vld [vmem:[%s195 + $0xc0] sm:$0xff]
    %v221 = vld [vmem:[%s195 + $0xc8] sm:$0xff]
    %v222 = vld [vmem:[%s195 + $0xd0] sm:$0xff]
    %v223 = vld [vmem:[%s195 + $0xd8] sm:$0xff]
    %v224 = vld [vmem:[%s195 + $0xe0] sm:$0xff]
    %v225 = vld [vmem:[%s195 + $0xe8] sm:$0xff]
    %v226 = vld [vmem:[%s195 + $0xf0] sm:$0xff]
    %v227 = vld [vmem:[%s195 + $0xf8] sm:$0xff]
    %v228 = vld [vmem:[%s195 + $0x100] sm:$0xff]
    %v229 = vld [vmem:[%s195 + $0x108] sm:$0xff]
    %v230 = vld [vmem:[%s195 + $0x110] sm:$0xff]
    %v231 = vld [vmem:[%s195 + $0x118] sm:$0xff]
    %v232 = vld [vmem:[%s195 + $0x120] sm:$0xff]
    %v233 = vld [vmem:[%s195 + $0x128] sm:$0xff]
    %v234 = vld [vmem:[%s195 + $0x130] sm:$0xff]
    %v235 = vld [vmem:[%s195 + $0x138] sm:$0xff]
    %v236 = vld [vmem:[%s195 + $0x140] sm:$0xff]
    %v237 = vld [vmem:[%s195 + $0x148] sm:$0xff]
    %v238 = vld [vmem:[%s195 + $0x150] sm:$0xff]
    %v239 = vld [vmem:[%s195 + $0x158] sm:$0xff]
    %v240 = vld [vmem:[%s195 + $0x160] sm:$0xff]
    %v241 = vld [vmem:[%s195 + $0x168] sm:$0xff]
    %v242 = vld [vmem:[%s195 + $0x170] sm:$0xff]
    %v243 = vld [vmem:[%s195 + $0x178] sm:$0xff]
    %v244 = vld [vmem:[%s195 + $0x180] sm:$0xff]
    %v245 = vld [vmem:[%s195 + $0x188] sm:$0xff]
    %v246 = vld [vmem:[%s195 + $0x190] sm:$0xff]
    %v247 = vld [vmem:[%s195 + $0x198] sm:$0xff]
    %v248 = vld [vmem:[%s195 + $0x1a0] sm:$0xff]
    %v249 = vld [vmem:[%s195 + $0x1a8] sm:$0xff]
    %v250 = vld [vmem:[%s195 + $0x1b0] sm:$0xff]
    %v251 = vld [vmem:[%s195 + $0x1b8] sm:$0xff]
    %v252 = vld [vmem:[%s195 + $0x1c0] sm:$0xff]
    %v253 = vld [vmem:[%s195 + $0x1c8] sm:$0xff]
    %v254 = vld [vmem:[%s195 + $0x1d0] sm:$0xff]
    %v255 = vld [vmem:[%s195 + $0x1d8] sm:$0xff]
    %v256 = vld [vmem:[%s195 + $0x1e0] sm:$0xff]
    %v257 = vld [vmem:[%s195 + $0x1e8] sm:$0xff]
    %v258 = vld [vmem:[%s195 + $0x1f0] sm:$0xff]
    %v259 = vld [vmem:[%s195 + $0x1f8] sm:$0xff]
    %s260 = scalar_lea.vmem %s2, 1
    %v261 = vld [vmem:[%s260] ss:$8 sm:$0x3]
    %v263 = vlaneseq
    %v264 = vshrl.u32 %v263, 7
    %v265 = vsub.s32 0, %v264
    %v266 = vrot.slane %v261, %v265
    %v267 = vlaneseq
    %v268 = vshrl.u32 %v267, 7
    %v269 = vsub.s32 1, %v268
    %v270 = vrot.slane %v261, %v269
    %273 = vmatprep.subr.mxu0 %v197
    %274 = vmatpush1.msra.mxu0 %v196
    %275 = vmatprep.subr.mxu0 %v199
    %276 = vmatpush1.msra.mxu0 %v198
    %277 = vmatprep.subr.mxu0 %v201
    %278 = vmatpush1.msra.mxu0 %v200
    %279 = vmatprep.subr.mxu0 %v203
    %280 = vmatpush1.msra.mxu0 %v202
    %281 = vmatprep.subr.mxu0 %v205
    %282 = vmatpush1.msra.mxu0 %v204
    %283 = vmatprep.subr.mxu0 %v207
    %284 = vmatpush1.msra.mxu0 %v206
    %285 = vmatprep.subr.mxu0 %v209
    %286 = vmatpush1.msra.mxu0 %v208
    %287 = vmatprep.subr.mxu0 %v211
    %288 = vmatpush1.msra.mxu0 %v210
    %289 = vmatprep.subr.mxu0 %v213
    %290 = vmatpush1.msra.mxu0 %v212
    %291 = vmatprep.subr.mxu0 %v215
    %292 = vmatpush1.msra.mxu0 %v214
    %293 = vmatprep.subr.mxu0 %v217
    %294 = vmatpush1.msra.mxu0 %v216
    %295 = vmatprep.subr.mxu0 %v219
    %296 = vmatpush1.msra.mxu0 %v218
    %297 = vmatprep.subr.mxu0 %v221
    %298 = vmatpush1.msra.mxu0 %v220
    %299 = vmatprep.subr.mxu0 %v223
    %300 = vmatpush1.msra.mxu0 %v222
    %301 = vmatprep.subr.mxu0 %v225
    %302 = vmatpush1.msra.mxu0 %v224
    %303 = vmatprep.subr.mxu0 %v227
    %304 = vmatpush1.msra.mxu0 %v226
    %305 = vmatprep.subr.mxu0 %v229
    %306 = vmatpush1.msra.mxu0 %v228
    %307 = vmatprep.subr.mxu0 %v231
    %308 = vmatpush1.msra.mxu0 %v230
    %309 = vmatprep.subr.mxu0 %v233
    %310 = vmatpush1.msra.mxu0 %v232
    %311 = vmatprep.subr.mxu0 %v235
    %312 = vmatpush1.msra.mxu0 %v234
    %313 = vmatprep.subr.mxu0 %v237
    %314 = vmatpush1.msra.mxu0 %v236
    %315 = vmatprep.subr.mxu0 %v239
    %316 = vmatpush1.msra.mxu0 %v238
    %317 = vmatprep.subr.mxu0 %v241
    %318 = vmatpush1.msra.mxu0 %v240
    %319 = vmatprep.subr.mxu0 %v243
    %320 = vmatpush1.msra.mxu0 %v242
    %321 = vmatprep.subr.mxu0 %v245
    %322 = vmatpush1.msra.mxu0 %v244
    %323 = vmatprep.subr.mxu0 %v247
    %324 = vmatpush1.msra.mxu0 %v246
    %325 = vmatprep.subr.mxu0 %v249
    %326 = vmatpush1.msra.mxu0 %v248
    %327 = vmatprep.subr.mxu0 %v251
    %328 = vmatpush1.msra.mxu0 %v250
    %329 = vmatprep.subr.mxu0 %v253
    %330 = vmatpush1.msra.mxu0 %v252
    %331 = vmatprep.subr.mxu0 %v255
    %332 = vmatpush1.msra.mxu0 %v254
    %333 = vmatprep.subr.mxu0 %v257
    %334 = vmatpush1.msra.mxu0 %v256
    %335 = vmatprep.subr.mxu0 %v259
    %336 = vmatpush1.msra.mxu0 %v258
    %337 = vmatprep.mubr.f32.mxu0 %v194
    %338 = vmatmul.mubr.f32.gmra.mrb[0].mxu0 %v193
    %v339 = vpop.f32.mrb[0].mxu0
    %v340 = vadd.f32 %v266, %v339
    %v341 = vpop.f32.mrb[0].mxu0
    %v342 = vadd.f32 %v270, %v341
    %343 = vdwg.mxu0
    %v344 = vmax.f32 %v340, 0.0
    %v345 = vmax.f32 %v342, 0.0
    %s346 = scalar_lea.vmem [#allocation2], 1024
    %v347 = vld [vmem:[%s346] sm:$0xff]
    %v348 = vld [vmem:[%s346 + $0x8] sm:$0xff]
    %v349 = vld [vmem:[%s346 + $0x10] sm:$0xff]
    %v350 = vld [vmem:[%s346 + $0x18] sm:$0xff]
    %v351 = vld [vmem:[%s346 + $0x20] sm:$0xff]
    %v352 = vld [vmem:[%s346 + $0x28] sm:$0xff]
    %v353 = vld [vmem:[%s346 + $0x30] sm:$0xff]
    %v354 = vld [vmem:[%s346 + $0x38] sm:$0xff]
    %v355 = vld [vmem:[%s346 + $0x40] sm:$0xff]
    %v356 = vld [vmem:[%s346 + $0x48] sm:$0xff]
    %v357 = vld [vmem:[%s346 + $0x50] sm:$0xff]
    %v358 = vld [vmem:[%s346 + $0x58] sm:$0xff]
    %v359 = vld [vmem:[%s346 + $0x60] sm:$0xff]
    %v360 = vld [vmem:[%s346 + $0x68] sm:$0xff]
    %v361 = vld [vmem:[%s346 + $0x70] sm:$0xff]
    %v362 = vld [vmem:[%s346 + $0x78] sm:$0xff]
    %v363 = vld [vmem:[%s346 + $0x80] sm:$0xff]
    %v364 = vld [vmem:[%s346 + $0x88] sm:$0xff]
    %v365 = vld [vmem:[%s346 + $0x90] sm:$0xff]
    %v366 = vld [vmem:[%s346 + $0x98] sm:$0xff]
    %v367 = vld [vmem:[%s346 + $0xa0] sm:$0xff]
    %v368 = vld [vmem:[%s346 + $0xa8] sm:$0xff]
    %v369 = vld [vmem:[%s346 + $0xb0] sm:$0xff]
    %v370 = vld [vmem:[%s346 + $0xb8] sm:$0xff]
    %v371 = vld [vmem:[%s346 + $0xc0] sm:$0xff]
    %v372 = vld [vmem:[%s346 + $0xc8] sm:$0xff]
    %v373 = vld [vmem:[%s346 + $0xd0] sm:$0xff]
    %v374 = vld [vmem:[%s346 + $0xd8] sm:$0xff]
    %v375 = vld [vmem:[%s346 + $0xe0] sm:$0xff]
    %v376 = vld [vmem:[%s346 + $0xe8] sm:$0xff]
    %v377 = vld [vmem:[%s346 + $0xf0] sm:$0xff]
    %v378 = vld [vmem:[%s346 + $0xf8] sm:$0xff]
    %v379 = vld [vmem:[%s346 + $0x100] sm:$0xff]
    %v380 = vld [vmem:[%s346 + $0x108] sm:$0xff]
    %v381 = vld [vmem:[%s346 + $0x110] sm:$0xff]
    %v382 = vld [vmem:[%s346 + $0x118] sm:$0xff]
    %v383 = vld [vmem:[%s346 + $0x120] sm:$0xff]
    %v384 = vld [vmem:[%s346 + $0x128] sm:$0xff]
    %v385 = vld [vmem:[%s346 + $0x130] sm:$0xff]
    %v386 = vld [vmem:[%s346 + $0x138] sm:$0xff]
    %v387 = vld [vmem:[%s346 + $0x140] sm:$0xff]
    %v388 = vld [vmem:[%s346 + $0x148] sm:$0xff]
    %v389 = vld [vmem:[%s346 + $0x150] sm:$0xff]
    %v390 = vld [vmem:[%s346 + $0x158] sm:$0xff]
    %v391 = vld [vmem:[%s346 + $0x160] sm:$0xff]
    %v392 = vld [vmem:[%s346 + $0x168] sm:$0xff]
    %v393 = vld [vmem:[%s346 + $0x170] sm:$0xff]
    %v394 = vld [vmem:[%s346 + $0x178] sm:$0xff]
    %v395 = vld [vmem:[%s346 + $0x180] sm:$0xff]
    %v396 = vld [vmem:[%s346 + $0x188] sm:$0xff]
    %v397 = vld [vmem:[%s346 + $0x190] sm:$0xff]
    %v398 = vld [vmem:[%s346 + $0x198] sm:$0xff]
    %v399 = vld [vmem:[%s346 + $0x1a0] sm:$0xff]
    %v400 = vld [vmem:[%s346 + $0x1a8] sm:$0xff]
    %v401 = vld [vmem:[%s346 + $0x1b0] sm:$0xff]
    %v402 = vld [vmem:[%s346 + $0x1b8] sm:$0xff]
    %v403 = vld [vmem:[%s346 + $0x1c0] sm:$0xff]
    %v404 = vld [vmem:[%s346 + $0x1c8] sm:$0xff]
    %v405 = vld [vmem:[%s346 + $0x1d0] sm:$0xff]
    %v406 = vld [vmem:[%s346 + $0x1d8] sm:$0xff]
    %v407 = vld [vmem:[%s346 + $0x1e0] sm:$0xff]
    %v408 = vld [vmem:[%s346 + $0x1e8] sm:$0xff]
    %v409 = vld [vmem:[%s346 + $0x1f0] sm:$0xff]
    %v410 = vld [vmem:[%s346 + $0x1f8] sm:$0xff]
    %s411 = scalar_lea.vmem %s2, 2
    %v412 = vld [vmem:[%s411] ss:$8 sm:$0x3]
    %v414 = vlaneseq
    %v415 = vshrl.u32 %v414, 7
    %v416 = vsub.s32 0, %v415
    %v417 = vrot.slane %v412, %v416
    %v418 = vlaneseq
    %v419 = vshrl.u32 %v418, 7
    %v420 = vsub.s32 1, %v419
    %v421 = vrot.slane %v412, %v420
    %424 = vmatprep.subr.mxu0 %v348
    %425 = vmatpush1.msra.mxu0 %v347
    %426 = vmatprep.subr.mxu0 %v350
    %427 = vmatpush1.msra.mxu0 %v349
    %428 = vmatprep.subr.mxu0 %v352
    %429 = vmatpush1.msra.mxu0 %v351
    %430 = vmatprep.subr.mxu0 %v354
    %431 = vmatpush1.msra.mxu0 %v353
    %432 = vmatprep.subr.mxu0 %v356
    %433 = vmatpush1.msra.mxu0 %v355
    %434 = vmatprep.subr.mxu0 %v358
    %435 = vmatpush1.msra.mxu0 %v357
    %436 = vmatprep.subr.mxu0 %v360
    %437 = vmatpush1.msra.mxu0 %v359
    %438 = vmatprep.subr.mxu0 %v362
    %439 = vmatpush1.msra.mxu0 %v361
    %440 = vmatprep.subr.mxu0 %v364
    %441 = vmatpush1.msra.mxu0 %v363
    %442 = vmatprep.subr.mxu0 %v366
    %443 = vmatpush1.msra.mxu0 %v365
    %444 = vmatprep.subr.mxu0 %v368
    %445 = vmatpush1.msra.mxu0 %v367
    %446 = vmatprep.subr.mxu0 %v370
    %447 = vmatpush1.msra.mxu0 %v369
    %448 = vmatprep.subr.mxu0 %v372
    %449 = vmatpush1.msra.mxu0 %v371
    %450 = vmatprep.subr.mxu0 %v374
    %451 = vmatpush1.msra.mxu0 %v373
    %452 = vmatprep.subr.mxu0 %v376
    %453 = vmatpush1.msra.mxu0 %v375
    %454 = vmatprep.subr.mxu0 %v378
    %455 = vmatpush1.msra.mxu0 %v377
    %456 = vmatprep.subr.mxu0 %v380
    %457 = vmatpush1.msra.mxu0 %v379
    %458 = vmatprep.subr.mxu0 %v382
    %459 = vmatpush1.msra.mxu0 %v381
    %460 = vmatprep.subr.mxu0 %v384
    %461 = vmatpush1.msra.mxu0 %v383
    %462 = vmatprep.subr.mxu0 %v386
    %463 = vmatpush1.msra.mxu0 %v385
    %464 = vmatprep.subr.mxu0 %v388
    %465 = vmatpush1.msra.mxu0 %v387
    %466 = vmatprep.subr.mxu0 %v390
    %467 = vmatpush1.msra.mxu0 %v389
    %468 = vmatprep.subr.mxu0 %v392
    %469 = vmatpush1.msra.mxu0 %v391
    %470 = vmatprep.subr.mxu0 %v394
    %471 = vmatpush1.msra.mxu0 %v393
    %472 = vmatprep.subr.mxu0 %v396
    %473 = vmatpush1.msra.mxu0 %v395
    %474 = vmatprep.subr.mxu0 %v398
    %475 = vmatpush1.msra.mxu0 %v397
    %476 = vmatprep.subr.mxu0 %v400
    %477 = vmatpush1.msra.mxu0 %v399
    %478 = vmatprep.subr.mxu0 %v402
    %479 = vmatpush1.msra.mxu0 %v401
    %480 = vmatprep.subr.mxu0 %v404
    %481 = vmatpush1.msra.mxu0 %v403
    %482 = vmatprep.subr.mxu0 %v406
    %483 = vmatpush1.msra.mxu0 %v405
    %484 = vmatprep.subr.mxu0 %v408
    %485 = vmatpush1.msra.mxu0 %v407
    %486 = vmatprep.subr.mxu0 %v410
    %487 = vmatpush1.msra.mxu0 %v409
    %488 = vmatprep.mubr.f32.mxu0 %v345
    %489 = vmatmul.mubr.f32.gmra.mrb[0].mxu0 %v344
    %v490 = vpop.f32.mrb[0].mxu0
    %v491 = vadd.f32 %v417, %v490
    %v492 = vpop.f32.mrb[0].mxu0
    %v493 = vadd.f32 %v421, %v492
    %494 = vdwg.mxu0
    %v495 = vmax.f32 %v491, 0.0
    %v496 = vmax.f32 %v493, 0.0
    %s497 = scalar_lea.vmem [#allocation2], 1536
    %v498 = vld [vmem:[%s497] sm:$0xff]
    %v499 = vld [vmem:[%s497 + $0x8] sm:$0xff]
    %v500 = vld [vmem:[%s497 + $0x10] sm:$0xff]
    %v501 = vld [vmem:[%s497 + $0x18] sm:$0xff]
    %v502 = vld [vmem:[%s497 + $0x20] sm:$0xff]
    %v503 = vld [vmem:[%s497 + $0x28] sm:$0xff]
    %v504 = vld [vmem:[%s497 + $0x30] sm:$0xff]
    %v505 = vld [vmem:[%s497 + $0x38] sm:$0xff]
    %v506 = vld [vmem:[%s497 + $0x40] sm:$0xff]
    %v507 = vld [vmem:[%s497 + $0x48] sm:$0xff]
    %v508 = vld [vmem:[%s497 + $0x50] sm:$0xff]
    %v509 = vld [vmem:[%s497 + $0x58] sm:$0xff]
    %v510 = vld [vmem:[%s497 + $0x60] sm:$0xff]
    %v511 = vld [vmem:[%s497 + $0x68] sm:$0xff]
    %v512 = vld [vmem:[%s497 + $0x70] sm:$0xff]
    %v513 = vld [vmem:[%s497 + $0x78] sm:$0xff]
    %v514 = vld [vmem:[%s497 + $0x80] sm:$0xff]
    %v515 = vld [vmem:[%s497 + $0x88] sm:$0xff]
    %v516 = vld [vmem:[%s497 + $0x90] sm:$0xff]
    %v517 = vld [vmem:[%s497 + $0x98] sm:$0xff]
    %v518 = vld [vmem:[%s497 + $0xa0] sm:$0xff]
    %v519 = vld [vmem:[%s497 + $0xa8] sm:$0xff]
    %v520 = vld [vmem:[%s497 + $0xb0] sm:$0xff]
    %v521 = vld [vmem:[%s497 + $0xb8] sm:$0xff]
    %v522 = vld [vmem:[%s497 + $0xc0] sm:$0xff]
    %v523 = vld [vmem:[%s497 + $0xc8] sm:$0xff]
    %v524 = vld [vmem:[%s497 + $0xd0] sm:$0xff]
    %v525 = vld [vmem:[%s497 + $0xd8] sm:$0xff]
    %v526 = vld [vmem:[%s497 + $0xe0] sm:$0xff]
    %v527 = vld [vmem:[%s497 + $0xe8] sm:$0xff]
    %v528 = vld [vmem:[%s497 + $0xf0] sm:$0xff]
    %v529 = vld [vmem:[%s497 + $0xf8] sm:$0xff]
    %v530 = vld [vmem:[%s497 + $0x100] sm:$0xff]
    %v531 = vld [vmem:[%s497 + $0x108] sm:$0xff]
    %v532 = vld [vmem:[%s497 + $0x110] sm:$0xff]
    %v533 = vld [vmem:[%s497 + $0x118] sm:$0xff]
    %v534 = vld [vmem:[%s497 + $0x120] sm:$0xff]
    %v535 = vld [vmem:[%s497 + $0x128] sm:$0xff]
    %v536 = vld [vmem:[%s497 + $0x130] sm:$0xff]
    %v537 = vld [vmem:[%s497 + $0x138] sm:$0xff]
    %v538 = vld [vmem:[%s497 + $0x140] sm:$0xff]
    %v539 = vld [vmem:[%s497 + $0x148] sm:$0xff]
    %v540 = vld [vmem:[%s497 + $0x150] sm:$0xff]
    %v541 = vld [vmem:[%s497 + $0x158] sm:$0xff]
    %v542 = vld [vmem:[%s497 + $0x160] sm:$0xff]
    %v543 = vld [vmem:[%s497 + $0x168] sm:$0xff]
    %v544 = vld [vmem:[%s497 + $0x170] sm:$0xff]
    %v545 = vld [vmem:[%s497 + $0x178] sm:$0xff]
    %v546 = vld [vmem:[%s497 + $0x180] sm:$0xff]
    %v547 = vld [vmem:[%s497 + $0x188] sm:$0xff]
    %v548 = vld [vmem:[%s497 + $0x190] sm:$0xff]
    %v549 = vld [vmem:[%s497 + $0x198] sm:$0xff]
    %v550 = vld [vmem:[%s497 + $0x1a0] sm:$0xff]
    %v551 = vld [vmem:[%s497 + $0x1a8] sm:$0xff]
    %v552 = vld [vmem:[%s497 + $0x1b0] sm:$0xff]
    %v553 = vld [vmem:[%s497 + $0x1b8] sm:$0xff]
    %v554 = vld [vmem:[%s497 + $0x1c0] sm:$0xff]
    %v555 = vld [vmem:[%s497 + $0x1c8] sm:$0xff]
    %v556 = vld [vmem:[%s497 + $0x1d0] sm:$0xff]
    %v557 = vld [vmem:[%s497 + $0x1d8] sm:$0xff]
    %v558 = vld [vmem:[%s497 + $0x1e0] sm:$0xff]
    %v559 = vld [vmem:[%s497 + $0x1e8] sm:$0xff]
    %v560 = vld [vmem:[%s497 + $0x1f0] sm:$0xff]
    %v561 = vld [vmem:[%s497 + $0x1f8] sm:$0xff]
    %s562 = scalar_lea.vmem %s2, 3
    %v563 = vld [vmem:[%s562] ss:$8 sm:$0x3]
    %v565 = vlaneseq
    %v566 = vshrl.u32 %v565, 7
    %v567 = vsub.s32 0, %v566
    %v568 = vrot.slane %v563, %v567
    %v569 = vlaneseq
    %v570 = vshrl.u32 %v569, 7
    %v571 = vsub.s32 1, %v570
    %v572 = vrot.slane %v563, %v571
    %575 = vmatprep.subr.mxu0 %v499
    %576 = vmatpush1.msra.mxu0 %v498
    %577 = vmatprep.subr.mxu0 %v501
    %578 = vmatpush1.msra.mxu0 %v500
    %579 = vmatprep.subr.mxu0 %v503
    %580 = vmatpush1.msra.mxu0 %v502
    %581 = vmatprep.subr.mxu0 %v505
    %582 = vmatpush1.msra.mxu0 %v504
    %583 = vmatprep.subr.mxu0 %v507
    %584 = vmatpush1.msra.mxu0 %v506
    %585 = vmatprep.subr.mxu0 %v509
    %586 = vmatpush1.msra.mxu0 %v508
    %587 = vmatprep.subr.mxu0 %v511
    %588 = vmatpush1.msra.mxu0 %v510
    %589 = vmatprep.subr.mxu0 %v513
    %590 = vmatpush1.msra.mxu0 %v512
    %591 = vmatprep.subr.mxu0 %v515
    %592 = vmatpush1.msra.mxu0 %v514
    %593 = vmatprep.subr.mxu0 %v517
    %594 = vmatpush1.msra.mxu0 %v516
    %595 = vmatprep.subr.mxu0 %v519
    %596 = vmatpush1.msra.mxu0 %v518
    %597 = vmatprep.subr.mxu0 %v521
    %598 = vmatpush1.msra.mxu0 %v520
    %599 = vmatprep.subr.mxu0 %v523
    %600 = vmatpush1.msra.mxu0 %v522
    %601 = vmatprep.subr.mxu0 %v525
    %602 = vmatpush1.msra.mxu0 %v524
    %603 = vmatprep.subr.mxu0 %v527
    %604 = vmatpush1.msra.mxu0 %v526
    %605 = vmatprep.subr.mxu0 %v529
    %606 = vmatpush1.msra.mxu0 %v528
    %607 = vmatprep.subr.mxu0 %v531
    %608 = vmatpush1.msra.mxu0 %v530
    %609 = vmatprep.subr.mxu0 %v533
    %610 = vmatpush1.msra.mxu0 %v532
    %611 = vmatprep.subr.mxu0 %v535
    %612 = vmatpush1.msra.mxu0 %v534
    %613 = vmatprep.subr.mxu0 %v537
    %614 = vmatpush1.msra.mxu0 %v536
    %615 = vmatprep.subr.mxu0 %v539
    %616 = vmatpush1.msra.mxu0 %v538
    %617 = vmatprep.subr.mxu0 %v541
    %618 = vmatpush1.msra.mxu0 %v540
    %619 = vmatprep.subr.mxu0 %v543
    %620 = vmatpush1.msra.mxu0 %v542
    %621 = vmatprep.subr.mxu0 %v545
    %622 = vmatpush1.msra.mxu0 %v544
    %623 = vmatprep.subr.mxu0 %v547
    %624 = vmatpush1.msra.mxu0 %v546
    %625 = vmatprep.subr.mxu0 %v549
    %626 = vmatpush1.msra.mxu0 %v548
    %627 = vmatprep.subr.mxu0 %v551
    %628 = vmatpush1.msra.mxu0 %v550
    %629 = vmatprep.subr.mxu0 %v553
    %630 = vmatpush1.msra.mxu0 %v552
    %631 = vmatprep.subr.mxu0 %v555
    %632 = vmatpush1.msra.mxu0 %v554
    %633 = vmatprep.subr.mxu0 %v557
    %634 = vmatpush1.msra.mxu0 %v556
    %635 = vmatprep.subr.mxu0 %v559
    %636 = vmatpush1.msra.mxu0 %v558
    %637 = vmatprep.subr.mxu0 %v561
    %638 = vmatpush1.msra.mxu0 %v560
    %639 = vmatprep.mubr.f32.mxu0 %v496
    %640 = vmatmul.mubr.f32.gmra.mrb[0].mxu0 %v495
    %v641 = vpop.f32.mrb[0].mxu0
    %v642 = vadd.f32 %v568, %v641
    %v643 = vpop.f32.mrb[0].mxu0
    %v644 = vadd.f32 %v572, %v643
    %645 = vdwg.mxu0
    %v646 = vmax.f32 %v642, 0.0
    %v647 = vmax.f32 %v644, 0.0
    %s648 = scalar_lea.vmem %s2, 4
    %v649 = vld [vmem:[%s648] ss:$8 sm:$0x3]
    %v651 = vlaneseq
    %v652 = vshrl.u32 %v651, 7
    %v653 = vsub.s32 0, %v652
    %v654 = vrot.slane %v649, %v653
    %v655 = vlaneseq
    %v656 = vshrl.u32 %v655, 7
    %v657 = vsub.s32 1, %v656
    %v658 = vrot.slane %v649, %v657
    %v661 = vmul.f32 %v646, %v654
    %v662 = vmul.f32 %v647, %v658
    %v663 = vadd.f32 %v661, %v662
    %664 = vadd.xlane.f32.xlu0 %v663
    %v665 = vpop.xlane.xlu0 %664
    %s666 = sld [smem:[#allocation5]]
    %v667 = vstv %s666
    %v668 = vadd.f32 %v665, %v667
    %vm669 = vcmask 7168
    %670 = vst.msk [vmem:[%s4] sm:$0xff] %vm669, %v668
    // Predicated region
    $region26: #{deeponet_modified_forward.1} parent=1 // pred_check
      _
    $region27: #{deeponet_modified_forward.1} parent=1 // pred_check_branch
      %672 = sbr.rel (0) target = $region29
    $region28: #{deeponet_modified_forward.1} parent=1 // pred_region
      _
    $region29: #{deeponet_modified_forward.1} parent=1 // pred_fallthru
      _
    // Predicated region
    $region30: #{deeponet_modified_forward.1} parent=1 // pred_check
      _
    $region31: #{deeponet_modified_forward.1} parent=1 // pred_check_branch
      %674 = sbr.rel (0) target = $region33
    $region32: #{deeponet_modified_forward.1} parent=1 // pred_region
      _
    $region33: #{deeponet_modified_forward.1} parent=1 // pred_fallthru
      _
    %675 = vsyncpa [#allocation3], 1
    %676 = vsyncpa [#allocation4], 1

</llo_original>
